<compile_context>
chip_gen: v7x
topology: tpu7x:2x2x1
jax: 0.10.0
libtpu: 0.0.40
codegen_flags: <defaults>
</compile_context>

<pallas_src>
import functools

import jax
import jax.numpy as jnp
from jax.experimental import pallas as pl
from jax.experimental.pallas import tpu as pltpu

_MIB = 1024 * 1024


def _sublane_align(dtype):
    """Sublane packing granularity: 8 for 32-bit, 16 for bf16, 32 for 8-bit."""
    bits = jnp.dtype(dtype).itemsize * 8
    return max(8, 256 // bits)


def _mxu_dtype(dtype):
    """MXU-native compute dtype: f32 inputs are fed to the MXU as bf16."""
    dt = jnp.dtype(dtype)
    return jnp.bfloat16 if dt == jnp.dtype(jnp.float32) else dt


def _choose_tile(dim, preferred, sublane_align):
    """Largest tile <= preferred that divides `dim`, preferring MXU/lane
    friendly multiples of 128, then sublane-aligned sizes; falls back to the
    full dim (always a legal block size)."""
    for align in (128, sublane_align):
        if align > preferred or align > dim:
            continue
        t = (min(preferred, dim) // align) * align
        while t >= align:
            if dim % t == 0:
                return t
            t -= align
    return dim


def _vmem_budgets():
    """Returns (working-set budget, vmem_limit_bytes, preferred tq).

    v7x has 64 MiB physical VMEM -> conservative budget & limit; v5e/v6e have
    128 MiB -> larger q tiles further cut K/V HBM re-streaming."""
    try:
        cap = pltpu.get_tpu_info().vmem_capacity_bytes
    except Exception:
        cap = 64 * _MIB                      # assume the smallest (v7x-like)
    if cap >= 96 * _MIB:                     # v5e / v6e
        return 56 * _MIB, 64 * _MIB, 1024
    return 20 * _MIB, 40 * _MIB, 512         # v7x (and unknown chips)


def _flash_vmem_estimate(tq, tk, D, Dv, in_bytes, out_bytes):
    # double-buffered blocks + scratch + compiler scratch for s/p temporaries.
    blocks = 2 * (tq * D * in_bytes + tk * D * in_bytes + tk * Dv * in_bytes
                  + tq * Dv * out_bytes + tq * 4)
    scratch = tq * Dv * 4 + 2 * tq * 4 + tq * D * 2
    score = int(2.5 * tq * tk * 4)
    return blocks + scratch + score


def _shrink_to_budget(tq, tk, Lq, Lk, est, budget):
    while est(tq, tk) > budget:
        if tk >= 256 and Lk % (tk // 2) == 0:
            tk //= 2
        elif tq >= 16 and Lq % (tq // 2) == 0:
            tq //= 2
        else:
            break
    return tq, tk


def _flash_kernel(q_ref, k_ref, v_ref, o_ref, lse_ref,
                  qs_sc, m_sc, l_sc, acc_sc, *, scale, mxu_dtype):
    """One (b*h, q-tile, k-tile) step of online-softmax attention."""
    ki = pl.program_id(2)

    @pl.when(ki == 0)
    def _():
        # Fold 1/temperature into q once per q-tile and pre-cast for the MXU.
        qs_sc[...] = (q_ref[0] * scale).astype(mxu_dtype)
        m_sc[...] = jnp.full(m_sc.shape, -jnp.inf, dtype=m_sc.dtype)
        l_sc[...] = jnp.zeros(l_sc.shape, dtype=l_sc.dtype)
        acc_sc[...] = jnp.zeros(acc_sc.shape, dtype=acc_sc.dtype)

    k = k_ref[0].astype(mxu_dtype)            # (tk, D)
    v = v_ref[0].astype(mxu_dtype)            # (tk, Dv)

    # scores (tq, tk): contract last dims -- no explicit k.T / XLU transpose.
    s = jax.lax.dot_general(qs_sc[...], k,
                            dimension_numbers=(((1,), (1,)), ((), ())),
                            preferred_element_type=jnp.float32)

    m_prev = m_sc[...]
    m_new = jnp.maximum(m_prev, jnp.max(s, axis=-1, keepdims=True))
    alpha = jnp.exp(m_prev - m_new)
    p = jnp.exp(s - m_new)                                      # (tq, tk) f32
    l_sc[...] = alpha * l_sc[...] + jnp.sum(p, axis=-1, keepdims=True)
    acc_sc[...] = alpha * acc_sc[...] + jnp.dot(
        p.astype(mxu_dtype), v, preferred_element_type=jnp.float32)
    m_sc[...] = m_new

    @pl.when(ki == pl.num_programs(2) - 1)
    def _():
        inv_l = pl.reciprocal(l_sc[...], approx=True)   # EUP vrcp, ~free slot
        o_ref[0] = (acc_sc[...] * inv_l).astype(o_ref.dtype)
        lse_ref[0] = m_sc[...] + jnp.log(l_sc[...])


def _attn_probs_kernel(q_ref, k_ref, lse_ref, attn_ref, *, scale, mxu_dtype):
    """Materialize softmax probabilities: exp(scale * q k^T - lse)."""
    qs = (q_ref[0] * scale).astype(mxu_dtype)
    k = k_ref[0].astype(mxu_dtype)
    s = jax.lax.dot_general(qs, k,
                            dimension_numbers=(((1,), (1,)), ((), ())),
                            preferred_element_type=jnp.float32)
    attn_ref[0] = jnp.exp(s - lse_ref[0]).astype(attn_ref.dtype)


def scaled_dot_product_attention(q, k, v, temperature, return_attn=True,
                                 attn_dtype=None):
    """q: [B,H,Lq,D], k: [B,H,Lk,D], v: [B,H,Lk,Dv].

    Returns (output, attn) like the PyTorch module (eval-mode dropout).
    With return_attn=False returns (output, lse) flash-style and skips the
    O(Lq*Lk) HBM write.  attn_dtype can be set (e.g. bf16) to halve the
    attn writeback traffic when the caller tolerates it."""
    B, H, Lq, D = q.shape
    _, _, Lk, _ = k.shape
    Dv = v.shape[-1]
    BH = B * H
    scale = 1.0 / float(temperature)

    mxu_dt = _mxu_dtype(q.dtype)
    sub = _sublane_align(q.dtype)
    in_bytes = jnp.dtype(q.dtype).itemsize
    attn_dt = jnp.dtype(q.dtype) if attn_dtype is None else jnp.dtype(attn_dtype)

    qf = q.reshape(BH, Lq, D)
    kf = k.reshape(BH, Lk, D)
    vf = v.reshape(BH, Lk, Dv)

    budget, vmem_limit, tq_pref = _vmem_budgets()

    tq = _choose_tile(Lq, tq_pref, sub)
    tk = _choose_tile(Lk, 1024, sub)

    # v7x megacore occupancy: keep the product of parallel axes >= 2.
    if BH * (Lq // tq) < 2 and Lq // 2 >= sub:
        tq_half = _choose_tile(Lq, Lq // 2, sub)
        if tq_half < Lq:
            tq = tq_half

    est1 = lambda a, b: _flash_vmem_estimate(a, b, D, Dv, in_bytes, in_bytes)
    tq, tk = _shrink_to_budget(tq, tk, Lq, Lk, est1, budget)
    nq, nk = Lq // tq, Lk // tk

    flash = pl.pallas_call(
        functools.partial(_flash_kernel, scale=scale, mxu_dtype=mxu_dt),
        out_shape=(
            jax.ShapeDtypeStruct((BH, Lq, Dv), q.dtype),
            jax.ShapeDtypeStruct((BH, Lq, 1), jnp.float32),
        ),
        grid_spec=pltpu.PrefetchScalarGridSpec(
            num_scalar_prefetch=0,
            grid=(BH, nq, nk),
            in_specs=[
                pl.BlockSpec((1, tq, D), lambda b, qi, ki: (b, qi, 0)),
                pl.BlockSpec((1, tk, D), lambda b, qi, ki: (b, ki, 0)),
                pl.BlockSpec((1, tk, Dv), lambda b, qi, ki: (b, ki, 0)),
            ],
            out_specs=[
                pl.BlockSpec((1, tq, Dv), lambda b, qi, ki: (b, qi, 0)),
                pl.BlockSpec((1, tq, 1), lambda b, qi, ki: (b, qi, 0)),
            ],
            scratch_shapes=[
                pltpu.VMEM((tq, D), mxu_dt),        # scaled + pre-cast q tile
                pltpu.VMEM((tq, 1), jnp.float32),   # running max
                pltpu.VMEM((tq, 1), jnp.float32),   # running sum
                pltpu.VMEM((tq, Dv), jnp.float32),  # output accumulator
            ],
        ),
        compiler_params=pltpu.CompilerParams(
            dimension_semantics=("parallel", "parallel", "arbitrary"),
            vmem_limit_bytes=vmem_limit,
        ),
    )
    out_f, lse_f = flash(qf, kf, vf)
    out = out_f.reshape(B, H, Lq, Dv)

    if not return_attn:
        return out, lse_f.reshape(B, H, Lq)

    # Second pass (only because the module returns the full attention matrix):
    # fully parallel grid, largest lane-dense output tiles under the budget.
    attn_bytes = attn_dt.itemsize
    tka = _choose_tile(Lk, 2048, 128)

    def est2(a, b):
        return (2 * (a * D * in_bytes + b * D * in_bytes + a * b * attn_bytes
                     + a * 4) + 2 * a * b * 4)

    tqa, tka = _shrink_to_budget(tq, tka, Lq, Lk, est2, budget)
    nqa, nka = Lq // tqa, Lk // tka

    attn_call = pl.pallas_call(
        functools.partial(_attn_probs_kernel, scale=scale, mxu_dtype=mxu_dt),
        out_shape=jax.ShapeDtypeStruct((BH, Lq, Lk), attn_dt),
        grid_spec=pltpu.PrefetchScalarGridSpec(
            num_scalar_prefetch=0,
            grid=(BH, nqa, nka),
            in_specs=[
                pl.BlockSpec((1, tqa, D), lambda b, qi, ki: (b, qi, 0)),
                pl.BlockSpec((1, tka, D), lambda b, qi, ki: (b, ki, 0)),
                pl.BlockSpec((1, tqa, 1), lambda b, qi, ki: (b, qi, 0)),
            ],
            out_specs=pl.BlockSpec((1, tqa, tka),
                                   lambda b, qi, ki: (b, qi, ki)),
        ),
        compiler_params=pltpu.CompilerParams(
            dimension_semantics=("parallel", "parallel", "parallel"),
            vmem_limit_bytes=vmem_limit,
        ),
    )
    attn = attn_call(qf, kf, lse_f).reshape(B, H, Lq, Lk)
    return out, attn


def _reference(q, k, v, temperature):
    hi = jax.lax.Precision.HIGHEST
    s = jnp.einsum("bhqd,bhkd->bhqk", q / temperature, k, precision=hi)
    attn = jax.nn.softmax(s, axis=-1)
    out = jnp.einsum("bhqk,bhkd->bhqd", attn, v, precision=hi)
    return out, attn


if __name__ == "__main__":
    # --- Small shapes consistent with the module's forward -------------------
    B, H, Lq, Lk, D, Dv = 2, 4, 8, 8, 32, 32
    temperature = float(D) ** 0.5

    key = jax.random.PRNGKey(0)
    kq, kk, kv = jax.random.split(key, 3)
    q = jax.random.normal(kq, (B, H, Lq, D), dtype=jnp.float32)
    k = jax.random.normal(kk, (B, H, Lk, D), dtype=jnp.float32)
    v = jax.random.normal(kv, (B, H, Lk, Dv), dtype=jnp.float32)

    out, attn = scaled_dot_product_attention(q, k, v, temperature)
    jax.block_until_ready((out, attn))

    out_ref, attn_ref = _reference(q, k, v, temperature)
    assert out.shape == (B, H, Lq, Dv) and attn.shape == (B, H, Lq, Lk)
    assert jnp.allclose(attn, attn_ref, atol=2e-2, rtol=2e-2), "attn mismatch"
    assert jnp.allclose(out, out_ref, atol=2e-2, rtol=5e-2), "output mismatch"

    # --- Larger shape to exercise tiling + multi-k-tile online softmax -------
    B2, H2, Lq2, Lk2, D2, Dv2 = 1, 2, 512, 2048, 64, 64
    temperature2 = float(D2) ** 0.5
    k2a, k2b, k2c = jax.random.split(jax.random.PRNGKey(0), 3)
    q2 = jax.random.normal(k2a, (B2, H2, Lq2, D2), dtype=jnp.float32)
    k2 = jax.random.normal(k2b, (B2, H2, Lk2, D2), dtype=jnp.float32)
    v2 = jax.random.normal(k2c, (B2, H2, Lk2, Dv2), dtype=jnp.float32)

    out2, attn2 = scaled_dot_product_attention(q2, k2, v2, temperature2)
    jax.block_until_ready((out2, attn2))

    out2_ref, attn2_ref = _reference(q2, k2, v2, temperature2)
    assert jnp.allclose(attn2, attn2_ref, atol=5e-3, rtol=5e-2), "attn2 mismatch"
    assert jnp.allclose(out2, out2_ref, atol=2e-2, rtol=5e-2), "output2 mismatch"

    print("KERNEL_OK")
</pallas_src>

<mosaic_0001>
module attributes {stable_mosaic.version = 11 : i64} {
  func.func @_flash_kernel(%arg0: i32, %arg1: i32, %arg2: i32, %arg3: memref<1x8x32xf32, #tpu.memory_space<vmem>>, %arg4: memref<1x8x32xf32, #tpu.memory_space<vmem>>, %arg5: memref<1x8x32xf32, #tpu.memory_space<vmem>>, %arg6: memref<1x8x32xf32, #tpu.memory_space<vmem>>, %arg7: memref<1x8x1xf32, #tpu.memory_space<vmem>>, %arg8: memref<8x32xbf16, #tpu.memory_space<vmem>>, %arg9: memref<8x1xf32, #tpu.memory_space<vmem>>, %arg10: memref<8x1xf32, #tpu.memory_space<vmem>>, %arg11: memref<8x32xf32, #tpu.memory_space<vmem>>) attributes {dimension_semantics = [#tpu.dimension_semantics<parallel>, #tpu.dimension_semantics<parallel>, #tpu.dimension_semantics<arbitrary>], iteration_bounds = array<i64: 8, 1, 1>, scalar_prefetch = 0 : i64, scratch_operands = 4 : i64, tpu.core_type = #tpu.core_type<tc>, window_params = [{transform_indices = @transform_0, window_bounds = array<i64: 1, 8, 32>}, {transform_indices = @transform_1, window_bounds = array<i64: 1, 8, 32>}, {transform_indices = @transform_2, window_bounds = array<i64: 1, 8, 32>}, {transform_indices = @transform_3, window_bounds = array<i64: 1, 8, 32>}, {transform_indices = @transform_4, window_bounds = array<i64: 1, 8, 1>}]} {
    %c0_i32 = arith.constant 0 : i32
    %0 = arith.cmpi eq, %arg2, %c0_i32 : i32
    %1 = arith.extui %0 : i1 to i32
    %c0_i32_0 = arith.constant 0 : i32
    %2 = arith.cmpi ne, %1, %c0_i32_0 : i32
    scf.if %2 {
      %c0_25 = arith.constant 0 : index
      %c0_26 = arith.constant 0 : index
      %c0_27 = arith.constant 0 : index
      %37 = vector.load %arg3[%c0_25, %c0_26, %c0_27] : memref<1x8x32xf32, #tpu.memory_space<vmem>>, vector<1x8x32xf32>
      %38 = vector.shape_cast %37 : vector<1x8x32xf32> to vector<8x32xf32>
      %cst_28 = arith.constant 0.176776692 : f32
      %39 = vector.broadcast %cst_28 : f32 to vector<8x32xf32>
      %40 = arith.mulf %38, %39 : vector<8x32xf32>
      %41 = arith.truncf %40 : vector<8x32xf32> to vector<8x32xbf16>
      %c0_29 = arith.constant 0 : index
      %c0_30 = arith.constant 0 : index
      %42 = vector.load %arg8[%c0_29, %c0_30] : memref<8x32xbf16, #tpu.memory_space<vmem>>, vector<8x32xbf16>
      tpu.vector_store %arg8[%c0_29, %c0_30], %41 {strides = array<i32>} : memref<8x32xbf16, #tpu.memory_space<vmem>>, vector<8x32xbf16>,
      %cst_31 = arith.constant 0xFF800000 : f32
      %43 = vector.broadcast %cst_31 : f32 to vector<8x1xf32>
      %c0_32 = arith.constant 0 : index
      %c0_33 = arith.constant 0 : index
      %44 = vector.load %arg9[%c0_32, %c0_33] : memref<8x1xf32, #tpu.memory_space<vmem>>, vector<8x1xf32>
      tpu.vector_store %arg9[%c0_32, %c0_33], %43 {strides = array<i32>} : memref<8x1xf32, #tpu.memory_space<vmem>>, vector<8x1xf32>,
      %cst_34 = arith.constant 0.000000e+00 : f32
      %45 = vector.broadcast %cst_34 : f32 to vector<8x1xf32>
      %c0_35 = arith.constant 0 : index
      %c0_36 = arith.constant 0 : index
      %46 = vector.load %arg10[%c0_35, %c0_36] : memref<8x1xf32, #tpu.memory_space<vmem>>, vector<8x1xf32>
      tpu.vector_store %arg10[%c0_35, %c0_36], %45 {strides = array<i32>} : memref<8x1xf32, #tpu.memory_space<vmem>>, vector<8x1xf32>,
      %cst_37 = arith.constant 0.000000e+00 : f32
      %47 = vector.broadcast %cst_37 : f32 to vector<8x32xf32>
      %c0_38 = arith.constant 0 : index
      %c0_39 = arith.constant 0 : index
      %48 = vector.load %arg11[%c0_38, %c0_39] : memref<8x32xf32, #tpu.memory_space<vmem>>, vector<8x32xf32>
      tpu.vector_store %arg11[%c0_38, %c0_39], %47 {strides = array<i32>} : memref<8x32xf32, #tpu.memory_space<vmem>>, vector<8x32xf32>,
    } else {
    }
    %c0 = arith.constant 0 : index
    %c0_1 = arith.constant 0 : index
    %c0_2 = arith.constant 0 : index
    %3 = vector.load %arg4[%c0, %c0_1, %c0_2] : memref<1x8x32xf32, #tpu.memory_space<vmem>>, vector<1x8x32xf32>
    %4 = vector.shape_cast %3 : vector<1x8x32xf32> to vector<8x32xf32>
    %5 = arith.truncf %4 : vector<8x32xf32> to vector<8x32xbf16>
    %c0_3 = arith.constant 0 : index
    %c0_4 = arith.constant 0 : index
    %c0_5 = arith.constant 0 : index
    %6 = vector.load %arg5[%c0_3, %c0_4, %c0_5] : memref<1x8x32xf32, #tpu.memory_space<vmem>>, vector<1x8x32xf32>
    %7 = vector.shape_cast %6 : vector<1x8x32xf32> to vector<8x32xf32>
    %8 = arith.truncf %7 : vector<8x32xf32> to vector<8x32xbf16>
    %c0_6 = arith.constant 0 : index
    %c0_7 = arith.constant 0 : index
    %9 = vector.load %arg8[%c0_6, %c0_7] : memref<8x32xbf16, #tpu.memory_space<vmem>>, vector<8x32xbf16>
    %cst = arith.constant dense<0.000000e+00> : vector<8x8xf32>
    %10 = tpu.matmul %9, %5, %cst {dimension_numbers = #tpu.dot_dimension_numbers<[1], [1], [0], [0], [0, 0, 1, 0], [], []>} : vector<8x32xbf16>, vector<8x32xbf16>, vector<8x8xf32> -> vector<8x8xf32>
    %c0_8 = arith.constant 0 : index
    %c0_9 = arith.constant 0 : index
    %11 = vector.load %arg9[%c0_8, %c0_9] : memref<8x1xf32, #tpu.memory_space<vmem>>, vector<8x1xf32>
    %cst_10 = arith.constant dense<0xFF800000> : vector<8xf32>
    %12 = vector.multi_reduction <maximumf>, %10, %cst_10 [1] : vector<8x8xf32> to vector<8xf32>
    %13 = vector.shape_cast %12 : vector<8xf32> to vector<8x1xf32>
    %14 = arith.maximumf %11, %13 : vector<8x1xf32>
    %15 = arith.subf %11, %14 : vector<8x1xf32>
    %16 = math.exp %15 : vector<8x1xf32>
    %17 = vector.broadcast %14 : vector<8x1xf32> to vector<8x8xf32>
    %18 = arith.subf %10, %17 : vector<8x8xf32>
    %19 = math.exp %18 : vector<8x8xf32>
    %c0_11 = arith.constant 0 : index
    %c0_12 = arith.constant 0 : index
    %20 = vector.load %arg10[%c0_11, %c0_12] : memref<8x1xf32, #tpu.memory_space<vmem>>, vector<8x1xf32>
    %21 = arith.mulf %16, %20 : vector<8x1xf32>
    %cst_13 = arith.constant dense<0.000000e+00> : vector<8xf32>
    %22 = vector.multi_reduction <add>, %19, %cst_13 [1] : vector<8x8xf32> to vector<8xf32>
    %23 = vector.shape_cast %22 : vector<8xf32> to vector<8x1xf32>
    %24 = arith.addf %21, %23 : vector<8x1xf32>
    %c0_14 = arith.constant 0 : index
    %c0_15 = arith.constant 0 : index
    %25 = vector.load %arg10[%c0_14, %c0_15] : memref<8x1xf32, #tpu.memory_space<vmem>>, vector<8x1xf32>
    tpu.vector_store %arg10[%c0_14, %c0_15], %24 {strides = array<i32>} : memref<8x1xf32, #tpu.memory_space<vmem>>, vector<8x1xf32>,
    %c0_16 = arith.constant 0 : index
    %c0_17 = arith.constant 0 : index
    %26 = vector.load %arg11[%c0_16, %c0_17] : memref<8x32xf32, #tpu.memory_space<vmem>>, vector<8x32xf32>
    %27 = vector.broadcast %16 : vector<8x1xf32> to vector<8x32xf32>
    %28 = arith.mulf %27, %26 : vector<8x32xf32>
    %29 = arith.truncf %19 : vector<8x8xf32> to vector<8x8xbf16>
    %cst_18 = arith.constant dense<0.000000e+00> : vector<8x32xf32>
    %30 = tpu.matmul %29, %8, %cst_18 {dimension_numbers = #tpu.dot_dimension_numbers<[1], [0], [0], [1], [0, 0, 1, 1], [], []>} : vector<8x8xbf16>, vector<8x32xbf16>, vector<8x32xf32> -> vector<8x32xf32>
    %31 = arith.addf %28, %30 : vector<8x32xf32>
    %c0_19 = arith.constant 0 : index
    %c0_20 = arith.constant 0 : index
    %32 = vector.load %arg11[%c0_19, %c0_20] : memref<8x32xf32, #tpu.memory_space<vmem>>, vector<8x32xf32>
    tpu.vector_store %arg11[%c0_19, %c0_20], %31 {strides = array<i32>} : memref<8x32xf32, #tpu.memory_space<vmem>>, vector<8x32xf32>,
    %c0_21 = arith.constant 0 : index
    %c0_22 = arith.constant 0 : index
    %33 = vector.load %arg9[%c0_21, %c0_22] : memref<8x1xf32, #tpu.memory_space<vmem>>, vector<8x1xf32>
    tpu.vector_store %arg9[%c0_21, %c0_22], %14 {strides = array<i32>} : memref<8x1xf32, #tpu.memory_space<vmem>>, vector<8x1xf32>,
    %c0_i32_23 = arith.constant 0 : i32
    %34 = arith.cmpi eq, %arg2, %c0_i32_23 : i32
    %35 = arith.extui %34 : i1 to i32
    %c0_i32_24 = arith.constant 0 : i32
    %36 = arith.cmpi ne, %35, %c0_i32_24 : i32
    scf.if %36 {
      %c0_25 = arith.constant 0 : index
      %c0_26 = arith.constant 0 : index
      %37 = vector.load %arg10[%c0_25, %c0_26] : memref<8x1xf32, #tpu.memory_space<vmem>>, vector<8x1xf32>
      %38 = tpu.reciprocal %37 {approx = true} : vector<8x1xf32> -> vector<8x1xf32>
      %c0_27 = arith.constant 0 : index
      %c0_28 = arith.constant 0 : index
      %39 = vector.load %arg11[%c0_27, %c0_28] : memref<8x32xf32, #tpu.memory_space<vmem>>, vector<8x32xf32>
      %40 = vector.broadcast %38 : vector<8x1xf32> to vector<8x32xf32>
      %41 = arith.mulf %39, %40 : vector<8x32xf32>
      %c0_29 = arith.constant 0 : index
      %c0_30 = arith.constant 0 : index
      %c0_31 = arith.constant 0 : index
      %42 = vector.load %arg6[%c0_29, %c0_30, %c0_31] : memref<1x8x32xf32, #tpu.memory_space<vmem>>, vector<1x8x32xf32>
      %43 = vector.shape_cast %42 : vector<1x8x32xf32> to vector<8x32xf32>
      %44 = vector.shape_cast %41 : vector<8x32xf32> to vector<1x8x32xf32>
      tpu.vector_store %arg6[%c0_29, %c0_30, %c0_31], %44 {strides = array<i32>} : memref<1x8x32xf32, #tpu.memory_space<vmem>>, vector<1x8x32xf32>,
      %c0_32 = arith.constant 0 : index
      %c0_33 = arith.constant 0 : index
      %45 = vector.load %arg9[%c0_32, %c0_33] : memref<8x1xf32, #tpu.memory_space<vmem>>, vector<8x1xf32>
      %c0_34 = arith.constant 0 : index
      %c0_35 = arith.constant 0 : index
      %46 = vector.load %arg10[%c0_34, %c0_35] : memref<8x1xf32, #tpu.memory_space<vmem>>, vector<8x1xf32>
      %47 = math.log %46 : vector<8x1xf32>
      %48 = arith.addf %45, %47 : vector<8x1xf32>
      %c0_36 = arith.constant 0 : index
      %c0_37 = arith.constant 0 : index
      %c0_38 = arith.constant 0 : index
      %49 = vector.load %arg7[%c0_36, %c0_37, %c0_38] : memref<1x8x1xf32, #tpu.memory_space<vmem>>, vector<1x8x1xf32>
      %50 = vector.shape_cast %49 : vector<1x8x1xf32> to vector<8x1xf32>
      %51 = vector.shape_cast %48 : vector<8x1xf32> to vector<1x8x1xf32>
      tpu.vector_store %arg7[%c0_36, %c0_37, %c0_38], %51 {strides = array<i32>} : memref<1x8x1xf32, #tpu.memory_space<vmem>>, vector<1x8x1xf32>,
    } else {
    }
    return
  }
  func.func @transform_0(%arg0: i32, %arg1: i32, %arg2: i32) -> (i32, i32, i32) {
    %c0_i32 = arith.constant 0 : i32
    %c0_i32_0 = arith.constant 0 : i32
    return %arg0, %arg1, %c0_i32 : i32, i32, i32
  }
  func.func @transform_1(%arg0: i32, %arg1: i32, %arg2: i32) -> (i32, i32, i32) {
    %c0_i32 = arith.constant 0 : i32
    %c0_i32_0 = arith.constant 0 : i32
    return %arg0, %arg2, %c0_i32 : i32, i32, i32
  }
  func.func @transform_2(%arg0: i32, %arg1: i32, %arg2: i32) -> (i32, i32, i32) {
    %c0_i32 = arith.constant 0 : i32
    %c0_i32_0 = arith.constant 0 : i32
    return %arg0, %arg2, %c0_i32 : i32, i32, i32
  }
  func.func @transform_3(%arg0: i32, %arg1: i32, %arg2: i32) -> (i32, i32, i32) {
    %c0_i32 = arith.constant 0 : i32
    %c0_i32_0 = arith.constant 0 : i32
    return %arg0, %arg1, %c0_i32 : i32, i32, i32
  }
  func.func @transform_4(%arg0: i32, %arg1: i32, %arg2: i32) -> (i32, i32, i32) {
    %c0_i32 = arith.constant 0 : i32
    %c0_i32_0 = arith.constant 0 : i32
    return %arg0, %arg1, %c0_i32 : i32, i32, i32
  }
}

</mosaic_0001>

<llo_original>
// kernel: tpu_custom_call.1
$region0: #{tpu_custom_call.1}
  #allocation0 [shape = 'u32[]', space=smem, size = 0x4, offset = 0x4, fixed_abs, tag = 'smem constant byte address 0x4 - core index']
  #allocation1 [shape = 'u32[144,128]{1,0:T(1,128)}', space=vmem, size = 0x12000, scoped, tag = 'internal scratch']
  #allocation2 [shape = 'bf16[8,32]{1,0:T(8,128)(2,1)}', space=vmem, size = 0x800, scoped, tag = 'scratch operand']
  #allocation3 [shape = 'f32[8,1]{1,0:T(8,128)}', space=vmem, size = 0x1000, scoped, tag = 'scratch operand']
  #allocation4 [shape = 'f32[8,1]{1,0:T(8,128)}', space=vmem, size = 0x1000, scoped, tag = 'scratch operand']
  #allocation5 [shape = 'f32[8,32]{1,0:T(8,128)}', space=vmem, size = 0x1000, scoped, tag = 'scratch operand']
  %s0 = inlined_call_operand.hbm [shape: f32[8,8,32], index: 0, kind: input, shape index: {}]
  %s1 = inlined_call_operand.hbm [shape: f32[8,8,32], index: 1, kind: input, shape index: {}]
  %s2 = inlined_call_operand.hbm [shape: f32[8,8,32], index: 2, kind: input, shape index: {}]
  %s3 = inlined_call_operand.hbm [shape: f32[8,8,32], index: 3, kind: output, shape index: {0}]
  %s4 = inlined_call_operand.vmem [shape: f32[8,8,1], index: 4, kind: output, shape index: {1}]
  %5 = xla_tuple %s3, %s4
  %s6 = sld [smem:[#allocation0]]
  $region73: #{tpu_custom_call.1} parent=0
    _
  %s8 = ssub.s32 1, %s6
  %s9 = scalar_select 0, %s8, %s6
  $region1: #{tpu_custom_call.1} parent=0
    #allocation6 [shape = 'u8[8192]{0}', space=vmem, size = 0x2000, scoped, tag = 'input window, operand 0']
    #allocation7 [shape = 's32[2]{0}', space=sflag, size = 0x8, scoped, tag = 'scoped memory for tpu_custom_call.1']
    #allocation8 [shape = 's32[2]{0}', space=sflag, size = 0x8, scoped, tag = 'scoped memory for tpu_custom_call.1']
    #allocation9 [shape = 'u8[8192]{0}', space=vmem, size = 0x2000, scoped, tag = 'input window, operand 1']
    #allocation10 [shape = 's32[2]{0}', space=sflag, size = 0x8, scoped, tag = 'scoped memory for tpu_custom_call.1']
    #allocation11 [shape = 'u8[8192]{0}', space=vmem, size = 0x2000, scoped, tag = 'input window, operand 2']
    #allocation12 [shape = 'u8[8192]{0}', space=vmem, size = 0x2000, scoped, tag = 'output window, operand 0']
    %10 = vsyncpa [#allocation7], 0
    %s11 = scalar_lea.sflag [#allocation7], 1
    %12 = vsyncpa %s11, 0
    %13 = vsyncpa [#allocation10], 0
    %s14 = scalar_lea.sflag [#allocation10], 1
    %15 = vsyncpa %s14, 0
    %16 = vsyncpa [#allocation8], 0
    %s17 = scalar_lea.sflag [#allocation8], 1
    %18 = vsyncpa %s17, 0
    loop: start=0, step=1, limit=10
    $region2: #{tpu_custom_call.1} parent=1 // loop_pre_header
      _
    $region3: #{tpu_custom_call.1} parent=1 // loop_header
      %s20 = sphi 0, %s24
      %p21 = scmp.ge.s32.totalorder %s20, 10
      %s27 = sphi 0, %s46
      %s28 = sphi 0, %s42
      %s29 = sphi 0, %s38
      %s30 = sphi 0, %s27
      %s31 = sphi 0, %s28
      %s32 = sphi 0, %s29
      %s33 = sphi 0, %s30
      %s34 = sphi 0, %s31
      %s35 = sphi 0, %s32
      %s51 = sphi 0, %s53
      %s54 = sphi 0, %s51
      %s55 = sphi 0, %s54
      %s71 = sphi 0, %s55
      %s79 = sphi 0, %s81
      %s82 = sphi 0, %s79
      %s83 = sphi 0, %s82
      %s99 = sphi 0, %s83
      %s107 = sphi 0, %s109
      %s110 = sphi 0, %s107
      %s111 = sphi 0, %s110
      %s127 = sphi 0, %s111
      %s135 = sphi 0, %s137
      %s138 = sphi 0, %s135
      %s139 = sphi 0, %s138
      %s155 = sphi 0, %s139
      %s163 = sphi 0, %s165
      %s166 = sphi 0, %s163
      %s167 = sphi 0, %s166
      %s183 = sphi 0, %s167
    $region4: #{tpu_custom_call.1} parent=1 // loop_header_branch
      %23 = sbr.rel (%p21) target = $region8
    $region5: #{tpu_custom_call.1} parent=1 // loop_body
      %s25 = ssub.s32 %s20, 1
      %s26 = ssub.s32 %s20, 2
      %s36 = sadd.s32 1, %s29
      %p37 = scmp.ge.s32.totalorder %s36, 1
      %s38 = scalar_select %p37, 0, %s36
      %s39 = sadd.s32 1, %s28
      %s40 = scalar_select %p37, %s39, %s28
      %p41 = scmp.ge.s32.totalorder %s40, 1
      %s42 = scalar_select %p41, 0, %s40
      %s43 = sadd.s32 1, %s27
      %s44 = scalar_select %p41, %s43, %s27
      %p45 = scmp.ge.s32.totalorder %s44, 8
      %s46 = scalar_select %p45, 0, %s44
      %s47 = ssub.s32 %s27, %s46
      %s48 = ssub.s32 %s28, %s42
      %s49 = sor.u32 %s47, %s48
      %p50 = scmp.eq.s32.totalorder %s49, 0
      %s52 = sadd.s32 %s51, 1
      %s53 = scalar_select %p50, %s51, %s52
      %p56 = pneg %p50
      %p57 = scmp.eq.s32.totalorder %s20, 7
      %p58 = por %p56, %p57
      %p59 = scmp.ne.s32.totalorder %s51, %s54
      %p60 = scmp.eq.s32.totalorder %s20, 0
      %p61 = por %p59, %p60
      %p62 = scmp.ne.s32.totalorder %s51, %s54
      %p63 = scmp.eq.s32.totalorder %s25, 7
      %p64 = por %p62, %p63
      %p65 = scmp.ne.s32.totalorder %s54, %s55
      %p66 = scmp.eq.s32.totalorder %s25, 0
      %p67 = por %p65, %p66
      %p68 = scmp.ne.s32.totalorder %s54, %s55
      %p69 = scmp.eq.s32.totalorder %s26, 7
      %p70 = por %p68, %p69
      %p72 = scmp.ne.s32.totalorder %s55, %s71
      %p73 = scmp.eq.s32.totalorder %s26, 0
      %p74 = por %p72, %p73
      %s75 = ssub.s32 %s27, %s46
      %s76 = ssub.s32 %s29, %s38
      %s77 = sor.u32 %s75, %s76
      %p78 = scmp.eq.s32.totalorder %s77, 0
      %s80 = sadd.s32 %s79, 1
      %s81 = scalar_select %p78, %s79, %s80
      %p84 = pneg %p78
      %p85 = scmp.eq.s32.totalorder %s20, 7
      %p86 = por %p84, %p85
      %p87 = scmp.ne.s32.totalorder %s79, %s82
      %p88 = scmp.eq.s32.totalorder %s20, 0
      %p89 = por %p87, %p88
      %p90 = scmp.ne.s32.totalorder %s79, %s82
      %p91 = scmp.eq.s32.totalorder %s25, 7
      %p92 = por %p90, %p91
      %p93 = scmp.ne.s32.totalorder %s82, %s83
      %p94 = scmp.eq.s32.totalorder %s25, 0
      %p95 = por %p93, %p94
      %p96 = scmp.ne.s32.totalorder %s82, %s83
      %p97 = scmp.eq.s32.totalorder %s26, 7
      %p98 = por %p96, %p97
      %p100 = scmp.ne.s32.totalorder %s83, %s99
      %p101 = scmp.eq.s32.totalorder %s26, 0
      %p102 = por %p100, %p101
      %s103 = ssub.s32 %s27, %s46
      %s104 = ssub.s32 %s29, %s38
      %s105 = sor.u32 %s103, %s104
      %p106 = scmp.eq.s32.totalorder %s105, 0
      %s108 = sadd.s32 %s107, 1
      %s109 = scalar_select %p106, %s107, %s108
      %p112 = pneg %p106
      %p113 = scmp.eq.s32.totalorder %s20, 7
      %p114 = por %p112, %p113
      %p115 = scmp.ne.s32.totalorder %s107, %s110
      %p116 = scmp.eq.s32.totalorder %s20, 0
      %p117 = por %p115, %p116
      %p118 = scmp.ne.s32.totalorder %s107, %s110
      %p119 = scmp.eq.s32.totalorder %s25, 7
      %p120 = por %p118, %p119
      %p121 = scmp.ne.s32.totalorder %s110, %s111
      %p122 = scmp.eq.s32.totalorder %s25, 0
      %p123 = por %p121, %p122
      %p124 = scmp.ne.s32.totalorder %s110, %s111
      %p125 = scmp.eq.s32.totalorder %s26, 7
      %p126 = por %p124, %p125
      %p128 = scmp.ne.s32.totalorder %s111, %s127
      %p129 = scmp.eq.s32.totalorder %s26, 0
      %p130 = por %p128, %p129
      %s131 = ssub.s32 %s27, %s46
      %s132 = ssub.s32 %s28, %s42
      %s133 = sor.u32 %s131, %s132
      %p134 = scmp.eq.s32.totalorder %s133, 0
      %s136 = sadd.s32 %s135, 1
      %s137 = scalar_select %p134, %s135, %s136
      %p140 = pneg %p134
      %p141 = scmp.eq.s32.totalorder %s20, 7
      %p142 = por %p140, %p141
      %p143 = scmp.ne.s32.totalorder %s135, %s138
      %p144 = scmp.eq.s32.totalorder %s20, 0
      %p145 = por %p143, %p144
      %p146 = scmp.ne.s32.totalorder %s135, %s138
      %p147 = scmp.eq.s32.totalorder %s25, 7
      %p148 = por %p146, %p147
      %p149 = scmp.ne.s32.totalorder %s138, %s139
      %p150 = scmp.eq.s32.totalorder %s25, 0
      %p151 = por %p149, %p150
      %p152 = scmp.ne.s32.totalorder %s138, %s139
      %p153 = scmp.eq.s32.totalorder %s26, 7
      %p154 = por %p152, %p153
      %p156 = scmp.ne.s32.totalorder %s139, %s155
      %p157 = scmp.eq.s32.totalorder %s26, 0
      %p158 = por %p156, %p157
      %s159 = ssub.s32 %s27, %s46
      %s160 = ssub.s32 %s28, %s42
      %s161 = sor.u32 %s159, %s160
      %p162 = scmp.eq.s32.totalorder %s161, 0
      %s164 = sadd.s32 %s163, 1
      %s165 = scalar_select %p162, %s163, %s164
      %p168 = pneg %p162
      %p169 = scmp.eq.s32.totalorder %s20, 7
      %p170 = por %p168, %p169
      %p171 = scmp.ne.s32.totalorder %s163, %s166
      %p172 = scmp.eq.s32.totalorder %s20, 0
      %p173 = por %p171, %p172
      %p174 = scmp.ne.s32.totalorder %s163, %s166
      %p175 = scmp.eq.s32.totalorder %s25, 7
      %p176 = por %p174, %p175
      %p177 = scmp.ne.s32.totalorder %s166, %s167
      %p178 = scmp.eq.s32.totalorder %s25, 0
      %p179 = por %p177, %p178
      %p180 = scmp.ne.s32.totalorder %s166, %s167
      %p181 = scmp.eq.s32.totalorder %s26, 7
      %p182 = por %p180, %p181
      %p184 = scmp.ne.s32.totalorder %s167, %s183
      %p185 = scmp.eq.s32.totalorder %s26, 0
      %p186 = por %p184, %p185
      %p187 = scmp.le.s32.totalorder 1, %s20
      %p188 = scmp.lt.s32.totalorder %s20, 9
      %p189 = pnand %p187, %p188
      %p190 = pneg %p189
      // Predicated region
      $region9: #{tpu_custom_call.1} parent=5 // pred_check
        _
      $region10: #{tpu_custom_call.1} parent=5 // pred_check_branch
        %192 = sbr.rel (%p189) target = $region12
      $region11: #{tpu_custom_call.1} parent=5 // pred_region
        %s193 = ssub.s32 %s20, 1
      $region12: #{tpu_custom_call.1} parent=5 // pred_fallthru
        _
      %p194 = scmp.lt.s32.totalorder %s20, 8
      // Predicated region
      $region13: #{tpu_custom_call.1} parent=5 // pred_check
        %p195 = pneg %p194
      $region14: #{tpu_custom_call.1} parent=5 // pred_check_branch
        %197 = sbr.rel (%p195) target = $region16
      $region15: #{tpu_custom_call.1} parent=5 // pred_region
        // Predicated region
        $region17: #{tpu_custom_call.1} parent=15 // pred_check
          %p198 = pneg %p61
        $region18: #{tpu_custom_call.1} parent=15 // pred_check_branch
          %200 = sbr.rel (%p198) target = $region20
        $region19: #{tpu_custom_call.1} parent=15 // pred_region
          %s201 = sand.u32 %s51, 1
          %s202 = scalar_lea.sflag [#allocation7], %s201
          %s203 = sand.u32 %s51, 1
          %s204 = smul.addr %s203, 8
          %s205 = scalar_lea.vmem [#allocation6], %s204
          %s207 = ssub.s32 128, 128
          %208 = vsyncadd %s202, %s207
          %s209 = sadd.s32 %s28, %s27
          %s210 = smul.addr %s209, 128
          %s211 = scalar_lea.hbm %s0, %s210
          %s213 = sshll.u32 %s205, 4
          %s214 = int_to_ptr.vmem [resolvable:$true] %s213
          %216 = dma.hbm_to_vmem [thread:$0]  %s211, 128, %s214, %s202
        $region20: #{tpu_custom_call.1} parent=15 // pred_fallthru
          _
        // Predicated region
        $region21: #{tpu_custom_call.1} parent=15 // pred_check
          %p217 = pneg %p89
        $region22: #{tpu_custom_call.1} parent=15 // pred_check_branch
          %219 = sbr.rel (%p217) target = $region24
        $region23: #{tpu_custom_call.1} parent=15 // pred_region
          %s220 = sand.u32 %s20, 1
          %s221 = scalar_lea.sflag [#allocation10], %s220
          %s222 = sand.u32 %s79, 1
          %s223 = smul.addr %s222, 8
          %s224 = scalar_lea.vmem [#allocation9], %s223
          %s226 = ssub.s32 128, 128
          %227 = vsyncadd %s221, %s226
          %s228 = sadd.s32 %s29, %s27
          %s229 = smul.addr %s228, 128
          %s230 = scalar_lea.hbm %s1, %s229
          %s232 = sshll.u32 %s224, 4
          %s233 = int_to_ptr.vmem [resolvable:$true] %s232
          %235 = dma.hbm_to_vmem [thread:$0]  %s230, 128, %s233, %s221
        $region24: #{tpu_custom_call.1} parent=15 // pred_fallthru
          _
        // Predicated region
        $region25: #{tpu_custom_call.1} parent=15 // pred_check
          %p236 = pneg %p117
        $region26: #{tpu_custom_call.1} parent=15 // pred_check_branch
          %238 = sbr.rel (%p236) target = $region28
        $region27: #{tpu_custom_call.1} parent=15 // pred_region
          %s239 = sand.u32 %s20, 1
          %s240 = scalar_lea.sflag [#allocation10], %s239
          %s241 = sand.u32 %s107, 1
          %s242 = smul.addr %s241, 8
          %s243 = scalar_lea.vmem [#allocation11], %s242
          %s245 = ssub.s32 128, 128
          %246 = vsyncadd %s240, %s245
          %s247 = sadd.s32 %s29, %s27
          %s248 = smul.addr %s247, 128
          %s249 = scalar_lea.hbm %s2, %s248
          %s251 = sshll.u32 %s243, 4
          %s252 = int_to_ptr.vmem [resolvable:$true] %s251
          %254 = dma.hbm_to_vmem [thread:$0]  %s249, 128, %s252, %s240
        $region28: #{tpu_custom_call.1} parent=15 // pred_fallthru
          _
      $region16: #{tpu_custom_call.1} parent=5 // pred_fallthru
        _
      %p255 = scmp.le.s32.totalorder 1, %s20
      %p256 = scmp.lt.s32.totalorder %s20, 9
      %p257 = pnand %p255, %p256
      %p258 = pneg %p257
      // Predicated region
      $region29: #{tpu_custom_call.1} parent=5 // pred_check
        _
      $region30: #{tpu_custom_call.1} parent=5 // pred_check_branch
        %260 = sbr.rel (%p257) target = $region32
      $region31: #{tpu_custom_call.1} parent=5 // pred_region
        %s261 = ssub.s32 %s20, 1
        %s262 = sand.u32 %s54, 1
        %s263 = scalar_lea.sflag [#allocation7], %s262
        %s264 = sand.u32 %s54, 1
        %s265 = smul.addr %s264, 8
        %s266 = scalar_lea.vmem [#allocation6], %s265
        // Predicated region
        $region33: #{tpu_custom_call.1} parent=31 // pred_check
          %p267 = pneg %p67
        $region34: #{tpu_custom_call.1} parent=31 // pred_check_branch
          %269 = sbr.rel (%p267) target = $region36
        $region35: #{tpu_custom_call.1} parent=31 // pred_region
          %270 = dma.done %s263, 128
        $region36: #{tpu_custom_call.1} parent=31 // pred_fallthru
          _
        %s271 = sand.u32 %s25, 1
        %s272 = scalar_lea.sflag [#allocation10], %s271
        %s273 = sand.u32 %s82, 1
        %s274 = smul.addr %s273, 8
        %s275 = scalar_lea.vmem [#allocation9], %s274
        // Predicated region
        $region37: #{tpu_custom_call.1} parent=31 // pred_check
          %p276 = pneg %p95
        $region38: #{tpu_custom_call.1} parent=31 // pred_check_branch
          %278 = sbr.rel (%p276) target = $region40
        $region39: #{tpu_custom_call.1} parent=31 // pred_region
          %279 = dma.done %s272, 128
        $region40: #{tpu_custom_call.1} parent=31 // pred_fallthru
          _
        %s280 = sand.u32 %s25, 1
        %s281 = scalar_lea.sflag [#allocation10], %s280
        %s282 = sand.u32 %s110, 1
        %s283 = smul.addr %s282, 8
        %s284 = scalar_lea.vmem [#allocation11], %s283
        // Predicated region
        $region41: #{tpu_custom_call.1} parent=31 // pred_check
          %p285 = pneg %p123
        $region42: #{tpu_custom_call.1} parent=31 // pred_check_branch
          %287 = sbr.rel (%p285) target = $region44
        $region43: #{tpu_custom_call.1} parent=31 // pred_region
          %288 = dma.done %s281, 128
        $region44: #{tpu_custom_call.1} parent=31 // pred_fallthru
          _
        %s289 = sand.u32 %s54, 1
        %s290 = scalar_lea.sflag [#allocation7], %s289
        %s291 = sand.u32 %s54, 1
        %s292 = smul.addr %s291, 8
        %s293 = scalar_lea.vmem [#allocation6], %s292
        %p294 = pneg %p67
        %p295 = pneg %p64
        %s296 = sand.u32 %s25, 1
        %s297 = scalar_lea.sflag [#allocation10], %s296
        %s298 = sand.u32 %s82, 1
        %s299 = smul.addr %s298, 8
        %s300 = scalar_lea.vmem [#allocation9], %s299
        %p301 = pneg %p95
        %p302 = pneg %p92
        %s303 = sand.u32 %s25, 1
        %s304 = scalar_lea.sflag [#allocation10], %s303
        %s305 = sand.u32 %s110, 1
        %s306 = smul.addr %s305, 8
        %s307 = scalar_lea.vmem [#allocation11], %s306
        %p308 = pneg %p123
        %p309 = pneg %p120
        %p310 = pneg %p151
        %p311 = pneg %p148
        %s312 = sand.u32 %s138, 1
        %s313 = scalar_lea.sflag [#allocation8], %s312
        %s314 = sand.u32 %s138, 1
        %s315 = smul.addr %s314, 8
        %s316 = scalar_lea.vmem [#allocation12], %s315
        %p317 = pneg %p179
        %p318 = pneg %p176
        %p319 = scmp.lt.s32.totalorder %s30, 7
        %s320 = scalar_select %p319, %s30, 7
        %p321 = scmp.lt.s32.totalorder %s31, 0
        %s322 = scalar_select %p321, %s31, 0
        %s323 = sadd.s32 %s322, %s320
        %s324 = smul.addr %s323, 8
        %s325 = scalar_lea.vmem %s4, %s324
        %p326 = scmp.lt.s32.totalorder %s30, 7
        %s327 = scalar_select %p326, %s30, 7
        %p328 = scmp.lt.s32.totalorder %s31, 0
        %s329 = scalar_select %p328, %s31, 0
        %s330 = sadd.s32 %s329, %s327
        %s331 = smul.addr %s330, 8
        %s332 = scalar_lea.vmem %s4, %s331
        %p334 = scmp.eq.s32.totalorder %s32, 0
        // Predicated region
        $region45: #{tpu_custom_call.1} parent=31 // pred_check
          %p335 = pneg %p334
        $region46: #{tpu_custom_call.1} parent=31 // pred_check_branch
          %337 = sbr.rel (%p335) target = $region48
        $region47: #{tpu_custom_call.1} parent=31 // pred_region
          %v338 = vld [vmem:[%s266] sm:$0xff]
          %v339 = vmul.f32 %v338, 0.17677669
          %v340 = vpack.c.bf16 %v339, %v339
          %vm341 = vcmask 257024
          %342 = vst.msk [vmem:[#allocation2] sm:$0xf] %vm341, %v340
          %vm343 = vcmask 7168
          %344 = vst.msk [vmem:[#allocation3] sm:$0xff] %vm343, -inf
          %345 = vst.msk [vmem:[#allocation4] sm:$0xff] %vm343, 0.0
          %vm346 = vcmask 261120
          %347 = vst.msk [vmem:[#allocation5] sm:$0xff] %vm346, 0.0
        $region48: #{tpu_custom_call.1} parent=31 // pred_fallthru
          _
        %v348 = vld [vmem:[%s275] sm:$0xff]
        %v349 = vpack.c.bf16 %v348, %v348
        %v350 = vld [vmem:[%s284] sm:$0xff]
        %v351 = vpack.c.bf16 %v350, %v350
        %v352 = vld [vmem:[#allocation2] sm:$0xf]
        %vm353 = vcmask 261120
        %v355 = vsel %vm353, %v352, 0
        %v358 = vsel %vm353, %v349, 0
        %360 = vmatprep.subr.bf16.mxu0 0
        %361 = vmatpush1.bf16.xpose.msra.mxu0 %v358
        %362 = vmatprep.subr.bf16.mxu0 0
        %363 = vmatpush1.bf16.xpose.msra.mxu0 0
        %364 = vmatprep.subr.bf16.mxu0 0
        %365 = vmatpush1.bf16.xpose.msra.mxu0 0
        %366 = vmatprep.subr.bf16.mxu0 0
        %367 = vmatpush1.bf16.xpose.msra.mxu0 0
        %368 = vmatprep.subr.bf16.mxu0 0
        %369 = vmatpush1.bf16.xpose.msra.mxu0 0
        %370 = vmatprep.subr.bf16.mxu0 0
        %371 = vmatpush1.bf16.xpose.msra.mxu0 0
        %372 = vmatprep.subr.bf16.mxu0 0
        %373 = vmatpush1.bf16.xpose.msra.mxu0 0
        %374 = vmatprep.subr.bf16.mxu0 0
        %375 = vmatpush1.bf16.xpose.msra.mxu0 0
        %376 = vmatprep.subr.bf16.mxu0 0
        %377 = vmatpush1.bf16.xpose.msra.mxu0 0
        %378 = vmatprep.subr.bf16.mxu0 0
        %379 = vmatpush1.bf16.xpose.msra.mxu0 0
        %380 = vmatprep.subr.bf16.mxu0 0
        %381 = vmatpush1.bf16.xpose.msra.mxu0 0
        %382 = vmatprep.subr.bf16.mxu0 0
        %383 = vmatpush1.bf16.xpose.msra.mxu0 0
        %384 = vmatprep.subr.bf16.mxu0 0
        %385 = vmatpush1.bf16.xpose.msra.mxu0 0
        %386 = vmatprep.subr.bf16.mxu0 0
        %387 = vmatpush1.bf16.xpose.msra.mxu0 0
        %388 = vmatprep.subr.bf16.mxu0 0
        %389 = vmatpush1.bf16.xpose.msra.mxu0 0
        %390 = vmatprep.subr.bf16.mxu0 0
        %391 = vmatpush1.bf16.xpose.msra.mxu0 0
        %392 = vmatprep.mubr.bf16.mxu0 0
        %393 = vmatmul.mubr.bf16.gmra.mrb[0].mxu0 %v355
        %v394 = vpop.f32.mrb[0].mxu0
        %v395 = vadd.f32 0.0, %v394
        %v396 = vpop.f32.mrb[0].mxu0
        %v397 = vpop.f32.mrb[0].mxu0
        %v398 = vpop.f32.mrb[0].mxu0
        %399 = vdwg.mxu0
        %v400 = vld [vmem:[#allocation3] sm:$0xff]
        %vm401 = vcmask 64512
        %v402 = vsel %vm401, %v395, -inf
        %403 = vmax.xlane.f32.xlu0 %v402
        %v404 = vpop.xlane.xlu0 %403
        %v405 = vmax.f32 %v400, %v404
        %v406 = vsub.f32 %v400, %v405
        %v407 = vmul.f32 %v406, 1.442695
        %v408 = vpow.pop %v407
        %410 = vset.pattern.permute.xlu0 0
        %411 = vperm.xlu0 %410, %v405
        %v412 = vpop.permute.xlu0 %411
        %v414 = vsub.f32 %v395, %v412
        %v415 = vmul.f32 %v414, 1.442695
        %v416 = vpow.pop %v415
        %v417 = vld [vmem:[#allocation4] sm:$0xff]
        %v418 = vmul.f32 %v408, %v417
        %v419 = vsel %vm401, %v416, 0.0
        %420 = vadd.xlane.f32.xlu0 %v419
        %v421 = vpop.xlane.xlu0 %420
        %v422 = vadd.f32 %v418, %v421
        %vm423 = vcmask 7168
        %424 = vst.msk [vmem:[#allocation4] sm:$0xff] %vm423, %v422
        %v425 = vld [vmem:[#allocation5] sm:$0xff]
        %427 = vset.pattern.permute.xlu0 0
        %428 = vperm.xlu0 %427, %v408
        %v429 = vpop.permute.xlu0 %428
        %v431 = vmul.f32 %v429, %v425
        %v432 = vpack.c.bf16 %v416, %v416
        %v434 = vsel %vm401, %v432, 0
        %vm436 = vcmask 1043456
        %v438 = vsel %vm436, %v351, 0
        %440 = vmatprep.subr.bf16.mxu0 0
        %441 = vmatpush1.bf16.msra.mxu0 %v438
        %442 = vmatprep.subr.bf16.mxu0 0
        %443 = vmatpush1.bf16.msra.mxu0 0
        %444 = vmatprep.subr.bf16.mxu0 0
        %445 = vmatpush1.bf16.msra.mxu0 0
        %446 = vmatprep.subr.bf16.mxu0 0
        %447 = vmatpush1.bf16.msra.mxu0 0
        %448 = vmatprep.subr.bf16.mxu0 0
        %449 = vmatpush1.bf16.msra.mxu0 0
        %450 = vmatprep.subr.bf16.mxu0 0
        %451 = vmatpush1.bf16.msra.mxu0 0
        %452 = vmatprep.subr.bf16.mxu0 0
        %453 = vmatpush1.bf16.msra.mxu0 0
        %454 = vmatprep.subr.bf16.mxu0 0
        %455 = vmatpush1.bf16.msra.mxu0 0
        %456 = vmatprep.subr.bf16.mxu0 0
        %457 = vmatpush1.bf16.msra.mxu0 0
        %458 = vmatprep.subr.bf16.mxu0 0
        %459 = vmatpush1.bf16.msra.mxu0 0
        %460 = vmatprep.subr.bf16.mxu0 0
        %461 = vmatpush1.bf16.msra.mxu0 0
        %462 = vmatprep.subr.bf16.mxu0 0
        %463 = vmatpush1.bf16.msra.mxu0 0
        %464 = vmatprep.subr.bf16.mxu0 0
        %465 = vmatpush1.bf16.msra.mxu0 0
        %466 = vmatprep.subr.bf16.mxu0 0
        %467 = vmatpush1.bf16.msra.mxu0 0
        %468 = vmatprep.subr.bf16.mxu0 0
        %469 = vmatpush1.bf16.msra.mxu0 0
        %470 = vmatprep.subr.bf16.mxu0 0
        %471 = vmatpush1.bf16.msra.mxu0 0
        %472 = vmatprep.mubr.bf16.mxu0 0
        %473 = vmatmul.mubr.bf16.gmra.mrb[0].mxu0 %v434
        %v474 = vpop.f32.mrb[0].mxu0
        %v475 = vadd.f32 0.0, %v474
        %v476 = vpop.f32.mrb[0].mxu0
        %v477 = vpop.f32.mrb[0].mxu0
        %v478 = vpop.f32.mrb[0].mxu0
        %479 = vdwg.mxu0
        %v480 = vadd.f32 %v431, %v475
        %481 = vst.msk [vmem:[#allocation5] sm:$0xff] %vm353, %v480
        %482 = vst.msk [vmem:[#allocation3] sm:$0xff] %vm423, %v405
        // Predicated region
        $region49: #{tpu_custom_call.1} parent=31 // pred_check
          %p483 = pneg %p334
        $region50: #{tpu_custom_call.1} parent=31 // pred_check_branch
          %485 = sbr.rel (%p483) target = $region52
        $region51: #{tpu_custom_call.1} parent=31 // pred_region
          %v486 = vld [vmem:[#allocation4] sm:$0xff]
          %v487 = vrcp.pop %v486
          %v488 = vld [vmem:[#allocation5] sm:$0xff]
          %490 = vset.pattern.permute.xlu0 0
          %491 = vperm.xlu0 %490, %v487
          %v492 = vpop.permute.xlu0 %491
          %v494 = vmul.f32 %v488, %v492
          %495 = vst.msk [vmem:[%s316] sm:$0xff] %vm353, %v494
          %v496 = vld [vmem:[#allocation3] sm:$0xff]
          %v497 = vld [vmem:[#allocation4] sm:$0xff]
          %v498 = vlog2.pop %v497
          %v499 = vmul.f32 %v498, 0.6931472
          %v500 = vadd.f32 %v496, %v499
          %501 = vst.msk [vmem:[%s332] sm:$0xff] %vm423, %v500
        $region52: #{tpu_custom_call.1} parent=31 // pred_fallthru
          _
        %s502 = sand.u32 %s138, 1
        %s503 = scalar_lea.sflag [#allocation8], %s502
        %s504 = sand.u32 %s138, 1
        %s505 = smul.addr %s504, 8
        %s506 = scalar_lea.vmem [#allocation12], %s505
        %p507 = scmp.lt.s32.totalorder %s30, 7
        %s508 = scalar_select %p507, %s30, 7
        %p509 = scmp.lt.s32.totalorder %s31, 0
        %s510 = scalar_select %p509, %s31, 0
        %s511 = sadd.s32 %s510, %s508
        %s512 = smul.addr %s511, 8
        %s513 = scalar_lea.vmem %s4, %s512
        // Predicated region
        $region53: #{tpu_custom_call.1} parent=31 // pred_check
          %p514 = pneg %p148
        $region54: #{tpu_custom_call.1} parent=31 // pred_check_branch
          %516 = sbr.rel (%p514) target = $region56
        $region55: #{tpu_custom_call.1} parent=31 // pred_region
          %s518 = ssub.s32 128, 128
          %519 = vsyncadd %s503, %s518
          %s520 = sadd.s32 %s31, %s30
          %s521 = smul.addr %s520, 128
          %s522 = scalar_lea.hbm %s3, %s521
          %s524 = sshll.u32 %s506, 4
          %s525 = int_to_ptr.vmem [resolvable:$true] %s524
          %527 = dma.vmem_to_hbm [thread:$0]  %s525, 128, %s522, %s503
        $region56: #{tpu_custom_call.1} parent=31 // pred_fallthru
          _
        // Predicated region
        $region57: #{tpu_custom_call.1} parent=31 // pred_check
          %p528 = pneg %p176
        $region58: #{tpu_custom_call.1} parent=31 // pred_check_branch
          %530 = sbr.rel (%p528) target = $region60
        $region59: #{tpu_custom_call.1} parent=31 // pred_region
          _
        $region60: #{tpu_custom_call.1} parent=31 // pred_fallthru
          _
      $region32: #{tpu_custom_call.1} parent=5 // pred_fallthru
        _
      %p531 = scmp.le.s32.totalorder 2, %s20
      // Predicated region
      $region61: #{tpu_custom_call.1} parent=5 // pred_check
        %p532 = pneg %p531
      $region62: #{tpu_custom_call.1} parent=5 // pred_check_branch
        %534 = sbr.rel (%p532) target = $region64
      $region63: #{tpu_custom_call.1} parent=5 // pred_region
        %s535 = ssub.s32 %s20, 2
        // Predicated region
        $region65: #{tpu_custom_call.1} parent=63 // pred_check
          %p536 = pneg %p154
        $region66: #{tpu_custom_call.1} parent=63 // pred_check_branch
          %538 = sbr.rel (%p536) target = $region68
        $region67: #{tpu_custom_call.1} parent=63 // pred_region
          %s539 = sand.u32 %s139, 1
          %s540 = scalar_lea.sflag [#allocation8], %s539
          %s541 = sand.u32 %s139, 1
          %s542 = smul.addr %s541, 8
          %s543 = scalar_lea.vmem [#allocation12], %s542
          %544 = dma.done %s540, 128
        $region68: #{tpu_custom_call.1} parent=63 // pred_fallthru
          _
        // Predicated region
        $region69: #{tpu_custom_call.1} parent=63 // pred_check
          %p545 = pneg %p182
        $region70: #{tpu_custom_call.1} parent=63 // pred_check_branch
          %547 = sbr.rel (%p545) target = $region72
        $region71: #{tpu_custom_call.1} parent=63 // pred_region
          %p548 = scmp.lt.s32.totalorder %s33, 7
          %s549 = scalar_select %p548, %s33, 7
          %p550 = scmp.lt.s32.totalorder %s34, 0
          %s551 = scalar_select %p550, %s34, 0
          %s552 = sadd.s32 %s551, %s549
          %s553 = smul.addr %s552, 8
          %s554 = scalar_lea.vmem %s4, %s553
        $region72: #{tpu_custom_call.1} parent=63 // pred_fallthru
          _
      $region64: #{tpu_custom_call.1} parent=5 // pred_fallthru
        _
    $region6: #{tpu_custom_call.1} parent=1 // loop_footer
      %s24 = sadd.s32 1, %s20
    $region7: #{tpu_custom_call.1} parent=1 // loop_footer_branch
      %19 = sbr.rel target = $region3
    $region8: #{tpu_custom_call.1} parent=1 // loop_exit
      _
    %555 = vsyncpa [#allocation7], 1
    %s556 = scalar_lea.sflag [#allocation7], 1
    %557 = vsyncpa %s556, 1
    %558 = vsyncpa [#allocation10], 1
    %s559 = scalar_lea.sflag [#allocation10], 1
    %560 = vsyncpa %s559, 1
    %561 = vsyncpa [#allocation8], 1
    %s562 = scalar_lea.sflag [#allocation8], 1
    %563 = vsyncpa %s562, 1

</llo_original>
